<compile_context>
chip_gen: v7x
topology: tpu7x:2x2x1
jax: 0.10.0
libtpu: 0.0.40
codegen_flags: <defaults>
</compile_context>

<pallas_src>
import numpy as np
import jax
import jax.numpy as jnp
from jax import lax
from jax.experimental import pallas as pl
from jax.experimental.pallas import tpu as pltpu


# ---------------------------------------------------------------------------
# reference-only GRU cell (PyTorch nn.GRUCell semantics, gate order r, z, n)
# ---------------------------------------------------------------------------
def _gru_cell(x, h, w_ih, w_hh, b_ih, b_hh, H):
    gi = jnp.dot(x, w_ih, preferred_element_type=jnp.float32) + b_ih
    gh = jnp.dot(h, w_hh, preferred_element_type=jnp.float32) + b_hh
    r = jax.nn.sigmoid(gi[:, 0:H] + gh[:, 0:H])
    z = jax.nn.sigmoid(gi[:, H:2 * H] + gh[:, H:2 * H])
    n = jnp.tanh(gi[:, 2 * H:3 * H] + r * gh[:, 2 * H:3 * H])
    return (1.0 - z) * n + z * h


# ---------------------------------------------------------------------------
# Pallas kernel
# ---------------------------------------------------------------------------
def _make_kernel(NN, H, S, L, A):
    f32 = jnp.float32
    bf16 = jnp.bfloat16
    eps = 1e-8

    def _group_selector(rows, groups, gsize):
        # sel[r, g] = 1.0 iff r // gsize == g   (built from iota: no int div needed)
        r = lax.broadcasted_iota(jnp.int32, (rows, groups), 0)
        g = lax.broadcasted_iota(jnp.int32, (rows, groups), 1)
        lo = g * gsize
        return ((r >= lo) & (r < lo + gsize)).astype(f32)

    def kernel(x_ref, hcat_ref, wx_ref, w1_ref, w2_ref, w3_ref, b_ref, out_ref):
        x = x_ref[...]                        # (BA, I)  f32
        hcat = hcat_ref[...]                  # (BA, 2H) f32 = [h_ability | h]
        b = b_ref[...]                        # (4, Bpad) f32 bias pack

        # ---- stage 1: fused [embed | fc1_ability | fc1], bf16 MXU, f32 acc
        bx = b[0:1, 0:NN + 2 * H]
        pre = jnp.dot(x.astype(bf16), wx_ref[...],
                      preferred_element_type=f32) + bx          # (BA, NN+2H)
        # LeakyReLU(0.01) on the embed columns (BatchNorm already folded into
        # the weights), ReLU on the fc1_ability / fc1 columns.
        col = lax.broadcasted_iota(jnp.int32, pre.shape, 1)
        slope = jnp.where(col < NN, 0.01, 0.0)
        xact = jnp.where(pre >= 0.0, pre, slope * pre)

        # ---- stage 2: fused [latent | gi_r | gi_z | gi_n] for BOTH GRU cells
        N1 = 2 * S * L + 6 * H
        b1 = b[1:2, 0:N1]
        t1 = jnp.dot(xact.astype(bf16), w1_ref[...],
                     preferred_element_type=f32) + b1           # (BA, 2SL+6H)
        latent = t1[:, 0:2 * S * L]
        go = 2 * S * L
        gi_r = t1[:, go:go + 2 * H]
        gi_z = t1[:, go + 2 * H:go + 4 * H]
        gi_n = t1[:, go + 4 * H:go + 6 * H]

        # ---- stage 3: fused hidden-side gates for both GRU cells
        b2 = b[2:3, 0:6 * H]
        gh = jnp.dot(hcat.astype(bf16), w2_ref[...],
                     preferred_element_type=f32) + b2           # (BA, 6H)
        r = jax.nn.sigmoid(gi_r + gh[:, 0:2 * H])
        z = jax.nn.sigmoid(gi_z + gh[:, 2 * H:4 * H])
        n = jnp.tanh(gi_n + r * gh[:, 4 * H:6 * H])
        h_new = (1.0 - z) * n + z * hcat                        # (BA, 2H) = [h_ab | h]

        # ---- stage 4: fused [tiled ability | q_all]  (fc2_ability tiled S x + fc2)
        N3 = S * L + S * A
        b3 = b[3:4, 0:N3]
        aq = jnp.dot(h_new.astype(bf16), w3_ref[...],
                     preferred_element_type=f32) + b3           # (BA, SL+SA)
        ab_t = aq[:, 0:S * L]                                   # ability tiled S times
        q_all = aq[:, S * L:N3]                                 # (BA, S*A)
        sub_lat = latent[:, 0:S * L]                            # eval: mean part only

        # ---- per-subtask cosine similarity via group-sum selector matmuls (MXU)
        G = _group_selector(S * L, S, L)                        # (SL, S)
        num = jnp.dot(ab_t * sub_lat, G, preferred_element_type=f32)   # (BA, S)
        lsq = jnp.dot(sub_lat * sub_lat, G, preferred_element_type=f32)
        asq = jnp.dot(ab_t * ab_t, G, preferred_element_type=f32)      # each col = ||a||^2
        a_n = jnp.maximum(jnp.sqrt(asq), eps)                   # clamp each norm (torch)
        l_n = jnp.maximum(jnp.sqrt(lsq), eps)
        logit = num / (a_n * l_n)                               # (BA, S)

        # ---- subtask_prob = softmax(logit, -1)   (sft_way == 'softmax')
        m = jnp.max(logit, axis=-1, keepdims=True)
        p = jnp.exp(logit - m)
        prob = p * pl.reciprocal(jnp.sum(p, axis=-1, keepdims=True), approx=True)

        # ---- q mixing via selector matmuls: expand prob, weight, group-sum
        ss = lax.broadcasted_iota(jnp.int32, (S, S * A), 0)
        cc = lax.broadcasted_iota(jnp.int32, (S, S * A), 1)
        E = ((cc >= ss * A) & (cc < ss * A + A)).astype(f32)    # (S, S*A)
        kk = lax.broadcasted_iota(jnp.int32, (S * A, A), 0)
        aa = lax.broadcasted_iota(jnp.int32, (S * A, A), 1)
        g2 = kk == aa
        for s in range(1, S):                                   # k % A == a, no int mod
            g2 = g2 | (kk == aa + s * A)
        G2 = g2.astype(f32)                                     # (S*A, A)
        p_exp = jnp.dot(prob, E, preferred_element_type=f32)    # (BA, S*A)
        q = jnp.dot(p_exp * q_all, G2, preferred_element_type=f32)     # (BA, A)

        # ---- single lane-dense output slab: [h_ab | h | latent | q | logit | pad]
        used = 2 * H + 2 * S * L + A + S
        pad_w = out_ref.shape[1] - used
        pieces = [h_new, latent, q, logit]
        if pad_w > 0:
            pieces.append(jnp.zeros((x.shape[0], pad_w), f32))
        out_ref[...] = jnp.concatenate(pieces, axis=1)

    return kernel


# ---------------------------------------------------------------------------
# one-time weight packing (outside the per-step hot path)
# ---------------------------------------------------------------------------
def pack_params(params, *, input_shape, nn_hidden, rnn_hidden_dim,
                n_subtasks, latent_dim, n_actions):
    I, NN, H = input_shape, nn_hidden, rnn_hidden_dim
    S, L, A = n_subtasks, latent_dim, n_actions
    f32, bf16 = jnp.float32, jnp.bfloat16
    del I

    # fold BatchNorm1d (eval mode) into the embed linear
    eps_bn = 1e-5
    scale = params["bn_gamma"] / jnp.sqrt(params["bn_var"] + eps_bn)
    shift = params["bn_beta"] - params["bn_mean"] * scale
    w_e0f = params["w_e0"] * scale[None, :]
    b_e0f = params["b_e0"] * scale[None, :] + shift[None, :]

    # stage 1: [embed | fc1_ability | fc1]
    Wx = jnp.concatenate([w_e0f, params["w_f1a"], params["w_f1"]], axis=1)     # (I, NN+2H)
    bx = jnp.concatenate([b_e0f, params["b_f1a"], params["b_f1"]], axis=1)     # (1, NN+2H)

    # stage 2: rows 0:NN <- embed output, NN:NN+H <- x_ability, NN+H:NN+2H <- x_q
    # cols: [latent (2SL) | r_ab r_q | z_ab z_q | n_ab n_q]
    N1 = 2 * S * L + 6 * H
    W1 = jnp.zeros((NN + 2 * H, N1), f32)
    b1 = jnp.zeros((1, N1), f32)
    W1 = W1.at[0:NN, 0:2 * S * L].set(params["w_e1"])
    b1 = b1.at[:, 0:2 * S * L].set(params["b_e1"])
    go = 2 * S * L
    for g in range(3):  # r, z, n
        c0 = go + 2 * H * g
        W1 = W1.at[NN:NN + H, c0:c0 + H].set(params["w_iha"][:, g * H:(g + 1) * H])
        W1 = W1.at[NN + H:NN + 2 * H, c0 + H:c0 + 2 * H].set(params["w_ih"][:, g * H:(g + 1) * H])
        b1 = b1.at[:, c0:c0 + H].set(params["b_iha"][:, g * H:(g + 1) * H])
        b1 = b1.at[:, c0 + H:c0 + 2 * H].set(params["b_ih"][:, g * H:(g + 1) * H])

    # stage 3: hidden-side gates, rows 0:H <- h_ability, H:2H <- h
    W2 = jnp.zeros((2 * H, 6 * H), f32)
    b2 = jnp.zeros((1, 6 * H), f32)
    for g in range(3):
        c0 = 2 * H * g
        W2 = W2.at[0:H, c0:c0 + H].set(params["w_hha"][:, g * H:(g + 1) * H])
        W2 = W2.at[H:2 * H, c0 + H:c0 + 2 * H].set(params["w_hh"][:, g * H:(g + 1) * H])
        b2 = b2.at[:, c0:c0 + H].set(params["b_hha"][:, g * H:(g + 1) * H])
        b2 = b2.at[:, c0 + H:c0 + 2 * H].set(params["b_hh"][:, g * H:(g + 1) * H])

    # stage 4: [fc2_ability tiled S times | fc2]
    N3 = S * L + S * A
    W3 = jnp.zeros((2 * H, N3), f32)
    W3 = W3.at[0:H, 0:S * L].set(jnp.tile(params["w_f2a"], (1, S)))
    W3 = W3.at[H:2 * H, S * L:N3].set(params["w_f2"])
    b3 = jnp.concatenate([jnp.tile(params["b_f2a"], (1, S)), params["b_f2"]], axis=1)

    # bias pack: one (4, Bpad) f32 buffer (biases stay f32 for accuracy)
    bwidth = max(NN + 2 * H, N1, 6 * H, N3)
    bwidth = ((bwidth + 127) // 128) * 128
    b_pack = jnp.zeros((4, bwidth), f32)
    b_pack = b_pack.at[0, 0:NN + 2 * H].set(bx[0])
    b_pack = b_pack.at[1, 0:N1].set(b1[0])
    b_pack = b_pack.at[2, 0:6 * H].set(b2[0])
    b_pack = b_pack.at[3, 0:N3].set(b3[0])

    return dict(Wx=Wx.astype(bf16), W1=W1.astype(bf16), W2=W2.astype(bf16),
                W3=W3.astype(bf16), b_pack=b_pack)


# ---------------------------------------------------------------------------
# forward wrapper
# ---------------------------------------------------------------------------
def dsr_agent_forward(packed, inputs, states, hidden_states, hidden_states_ability,
                      *, n_agents, n_subtasks, latent_dim, n_actions,
                      rnn_hidden_dim, nn_hidden):
    del states  # unused on this path (as in the PyTorch forward)
    S, L, A, H, NN = n_subtasks, latent_dim, n_actions, rnn_hidden_dim, nn_hidden
    BA, I = inputs.shape
    h_in = hidden_states.reshape(-1, H)
    h_in_ab = hidden_states_ability.reshape(-1, H)
    hcat = jnp.concatenate([h_in_ab, h_in], axis=1)          # (BA, 2H) = [h_ab | h]

    used = 2 * H + 2 * S * L + A + S
    OUT_W = ((used + 127) // 128) * 128                      # lane-dense output slab

    vmem = pl.BlockSpec(memory_space=pltpu.MemorySpace.VMEM)
    slab = pl.pallas_call(
        _make_kernel(NN, H, S, L, A),
        out_shape=jax.ShapeDtypeStruct((BA, OUT_W), jnp.float32),
        in_specs=[vmem] * 7,
        out_specs=vmem,
    )(inputs, hcat, packed["Wx"], packed["W1"], packed["W2"], packed["W3"],
      packed["b_pack"])

    h_ab = slab[:, 0:H]
    h = slab[:, H:2 * H]
    latent = slab[:, 2 * H:2 * H + 2 * S * L]
    sub_lat = slab[:, 2 * H:2 * H + S * L]
    q = slab[:, 2 * H + 2 * S * L:2 * H + 2 * S * L + A]
    logit = slab[:, 2 * H + 2 * S * L + A:2 * H + 2 * S * L + A + S]

    _inputs = inputs                                          # eval mode: inputs.clone()
    return (
        q,
        h,
        h_ab,
        latent.reshape(-1, n_agents, 2 * S * L),
        sub_lat.reshape(-1, n_agents, S * L),
        logit.reshape(-1, n_agents, S),
        _inputs.reshape(-1, n_agents, I),
    )


# ---------------------------------------------------------------------------
# pure-JAX f32 reference (same math, no Pallas) for correctness checking
# ---------------------------------------------------------------------------
def dsr_agent_reference(params, inputs, hidden_states, hidden_states_ability,
                        n_agents, S, L, A, H):
    I = inputs.shape[1]
    x = inputs
    h_in = hidden_states.reshape(-1, H)
    h_in_ab = hidden_states_ability.reshape(-1, H)

    eps_bn = 1e-5
    scale = params["bn_gamma"] / jnp.sqrt(params["bn_var"] + eps_bn)
    shift = params["bn_beta"] - params["bn_mean"] * scale
    e = x @ params["w_e0"] + params["b_e0"]
    e = e * scale[None, :] + shift[None, :]
    e = jnp.where(e >= 0.0, e, 0.01 * e)
    latent = e @ params["w_e1"] + params["b_e1"]
    sub_lat = latent[:, : S * L]

    xa = jnp.maximum(x @ params["w_f1a"] + params["b_f1a"], 0.0)
    h_ab = _gru_cell(xa, h_in_ab, params["w_iha"], params["w_hha"],
                     params["b_iha"], params["b_hha"], H)
    ability = h_ab @ params["w_f2a"] + params["b_f2a"]

    ability_e = jnp.repeat(ability[:, None, :], S, axis=1).reshape(-1, L)
    sub_e = sub_lat.reshape(-1, L)
    eps = 1e-8
    an = jnp.maximum(jnp.linalg.norm(ability_e, axis=-1), eps)
    ln = jnp.maximum(jnp.linalg.norm(sub_e, axis=-1), eps)
    logit = (jnp.sum(ability_e * sub_e, axis=-1) / (an * ln)).reshape(-1, n_agents, S)
    prob = jax.nn.softmax(logit, axis=-1).reshape(-1, 1, S)

    xq = jnp.maximum(x @ params["w_f1"] + params["b_f1"], 0.0)
    h = _gru_cell(xq, h_in, params["w_ih"], params["w_hh"],
                  params["b_ih"], params["b_hh"], H)
    q_all = (h @ params["w_f2"] + params["b_f2"]).reshape(-1, S, A)
    q = jnp.einsum("bos,bsa->boa", prob, q_all)[:, 0, :]

    return (q, h, h_ab,
            latent.reshape(-1, n_agents, 2 * S * L),
            sub_lat.reshape(-1, n_agents, S * L),
            logit,
            x.reshape(-1, n_agents, I))


# ---------------------------------------------------------------------------
# deterministic parameter init (synthetic; shapes follow DSRAgent.__init__)
# ---------------------------------------------------------------------------
def init_params(key, I, H, NN, S, L, A):
    ks = iter(jax.random.split(key, 32))

    def u(shape, fan_in):
        b = 1.0 / np.sqrt(fan_in)
        return jax.random.uniform(next(ks), shape, jnp.float32, -b, b)

    p = {}
    # embed_net
    p["w_e0"], p["b_e0"] = u((I, NN), I), u((1, NN), I)
    p["bn_gamma"] = jax.random.uniform(next(ks), (NN,), jnp.float32, 0.5, 1.5)
    p["bn_beta"] = jax.random.uniform(next(ks), (NN,), jnp.float32, -0.1, 0.1)
    p["bn_mean"] = jnp.zeros((NN,), jnp.float32)
    p["bn_var"] = jnp.ones((NN,), jnp.float32)
    p["w_e1"], p["b_e1"] = u((NN, 2 * S * L), NN), u((1, 2 * S * L), NN)
    # ability branch
    p["w_f1a"], p["b_f1a"] = u((I, H), I), u((1, H), I)
    p["w_iha"], p["w_hha"] = u((H, 3 * H), H), u((H, 3 * H), H)
    p["b_iha"], p["b_hha"] = u((1, 3 * H), H), u((1, 3 * H), H)
    p["w_f2a"], p["b_f2a"] = u((H, L), H), u((1, L), H)
    # q branch
    p["w_f1"], p["b_f1"] = u((I, H), I), u((1, H), I)
    p["w_ih"], p["w_hh"] = u((H, 3 * H), H), u((H, 3 * H), H)
    p["b_ih"], p["b_hh"] = u((1, 3 * H), H), u((1, 3 * H), H)
    p["w_f2"], p["b_f2"] = u((H, S * A), H), u((1, S * A), H)
    # NOTE: decoder / ablation_embed_net exist in __init__ but are only used on
    # train-mode / ablation paths, which are not exercised here.
    return p


if __name__ == "__main__":
    # small config consistent with the module
    bs, n_agents = 3, 2
    input_shape = 16
    rnn_hidden_dim = 32
    NN_HIDDEN_SIZE = 32
    n_subtasks = 4
    latent_dim = 8
    n_actions = 6
    BA = bs * n_agents

    key = jax.random.PRNGKey(0)
    kp, kx, kh, kha = jax.random.split(key, 4)
    params = init_params(kp, input_shape, rnn_hidden_dim, NN_HIDDEN_SIZE,
                         n_subtasks, latent_dim, n_actions)
    inputs = jax.random.normal(kx, (BA, input_shape), jnp.float32)
    hidden_states = 0.1 * jax.random.normal(kh, (bs, n_agents, rnn_hidden_dim), jnp.float32)
    hidden_states_ability = 0.1 * jax.random.normal(kha, (bs, n_agents, rnn_hidden_dim), jnp.float32)
    states = None  # unused by the forward pass

    packed = pack_params(params, input_shape=input_shape, nn_hidden=NN_HIDDEN_SIZE,
                         rnn_hidden_dim=rnn_hidden_dim, n_subtasks=n_subtasks,
                         latent_dim=latent_dim, n_actions=n_actions)

    outs = dsr_agent_forward(packed, inputs, states, hidden_states, hidden_states_ability,
                             n_agents=n_agents, n_subtasks=n_subtasks,
                             latent_dim=latent_dim, n_actions=n_actions,
                             rnn_hidden_dim=rnn_hidden_dim, nn_hidden=NN_HIDDEN_SIZE)
    outs = jax.block_until_ready(outs)

    refs = dsr_agent_reference(params, inputs, hidden_states, hidden_states_ability,
                               n_agents, n_subtasks, latent_dim, n_actions, rnn_hidden_dim)
    # tolerance 3e-2: matmul operands run on the bf16 MXU path (f32 accumulate),
    # reference is pure f32.
    for o, r in zip(outs, refs):
        np.testing.assert_allclose(np.asarray(o), np.asarray(r), rtol=3e-2, atol=3e-2)

    print("KERNEL_OK")
</pallas_src>

<mosaic_0001>
module attributes {stable_mosaic.version = 11 : i64} {
  func.func @kernel(%arg0: memref<6x16xf32, #tpu.memory_space<vmem>>, %arg1: memref<6x64xf32, #tpu.memory_space<vmem>>, %arg2: memref<16x96xbf16, #tpu.memory_space<vmem>>, %arg3: memref<96x256xbf16, #tpu.memory_space<vmem>>, %arg4: memref<64x192xbf16, #tpu.memory_space<vmem>>, %arg5: memref<64x56xbf16, #tpu.memory_space<vmem>>, %arg6: memref<4x256xf32, #tpu.memory_space<vmem>>, %arg7: memref<6x256xf32, #tpu.memory_space<vmem>>) attributes {dimension_semantics = [], scalar_prefetch = 0 : i64, scratch_operands = 0 : i64, tpu.core_type = #tpu.core_type<tc>} {
    %c0 = arith.constant 0 : index
    %c0_0 = arith.constant 0 : index
    %0 = vector.load %arg0[%c0, %c0_0] : memref<6x16xf32, #tpu.memory_space<vmem>>, vector<6x16xf32>
    %c0_1 = arith.constant 0 : index
    %c0_2 = arith.constant 0 : index
    %1 = vector.load %arg1[%c0_1, %c0_2] : memref<6x64xf32, #tpu.memory_space<vmem>>, vector<6x64xf32>
    %c0_3 = arith.constant 0 : index
    %c0_4 = arith.constant 0 : index
    %2 = vector.load %arg6[%c0_3, %c0_4] : memref<4x256xf32, #tpu.memory_space<vmem>>, vector<4x256xf32>
    %3 = vector.extract_strided_slice %2 {offsets = [0, 0], sizes = [1, 96], strides = [1, 1]} : vector<4x256xf32> to vector<1x96xf32>
    %4 = arith.truncf %0 : vector<6x16xf32> to vector<6x16xbf16>
    %c0_5 = arith.constant 0 : index
    %c0_6 = arith.constant 0 : index
    %5 = vector.load %arg2[%c0_5, %c0_6] : memref<16x96xbf16, #tpu.memory_space<vmem>>, vector<16x96xbf16>
    %cst = arith.constant dense<0.000000e+00> : vector<6x96xf32>
    %6 = tpu.matmul %4, %5, %cst {dimension_numbers = #tpu.dot_dimension_numbers<[1], [0], [0], [1], [0, 0, 1, 1], [], []>} : vector<6x16xbf16>, vector<16x96xbf16>, vector<6x96xf32> -> vector<6x96xf32>
    %7 = vector.broadcast %3 : vector<1x96xf32> to vector<6x96xf32>
    %8 = arith.addf %6, %7 : vector<6x96xf32>
    %9 = tpu.iota {dimensions = array<i32: 1>} : vector<6x96xi32>
    %c32_i32 = arith.constant 32 : i32
    %10 = vector.broadcast %c32_i32 : i32 to vector<6x96xi32>
    %11 = arith.cmpi slt, %9, %10 : vector<6x96xi32>
    %cst_7 = arith.constant 0.00999999977 : f32
    %cst_8 = arith.constant 0.000000e+00 : f32
    %12 = vector.broadcast %cst_7 : f32 to vector<6x96xf32>
    %13 = vector.broadcast %cst_8 : f32 to vector<6x96xf32>
    %14 = arith.select %11, %12, %13 : vector<6x96xi1>, vector<6x96xf32>
    %cst_9 = arith.constant 0.000000e+00 : f32
    %15 = vector.broadcast %cst_9 : f32 to vector<6x96xf32>
    %16 = arith.cmpf oge, %8, %15 : vector<6x96xf32>
    %17 = arith.mulf %14, %8 : vector<6x96xf32>
    %18 = arith.select %16, %8, %17 : vector<6x96xi1>, vector<6x96xf32>
    %19 = vector.extract_strided_slice %2 {offsets = [1, 0], sizes = [1, 256], strides = [1, 1]} : vector<4x256xf32> to vector<1x256xf32>
    %20 = arith.truncf %18 : vector<6x96xf32> to vector<6x96xbf16>
    %c0_10 = arith.constant 0 : index
    %c0_11 = arith.constant 0 : index
    %21 = vector.load %arg3[%c0_10, %c0_11] : memref<96x256xbf16, #tpu.memory_space<vmem>>, vector<96x256xbf16>
    %cst_12 = arith.constant dense<0.000000e+00> : vector<6x256xf32>
    %22 = tpu.matmul %20, %21, %cst_12 {dimension_numbers = #tpu.dot_dimension_numbers<[1], [0], [0], [1], [0, 0, 1, 1], [], []>} : vector<6x96xbf16>, vector<96x256xbf16>, vector<6x256xf32> -> vector<6x256xf32>
    %23 = vector.broadcast %19 : vector<1x256xf32> to vector<6x256xf32>
    %24 = arith.addf %22, %23 : vector<6x256xf32>
    %25 = vector.extract_strided_slice %24 {offsets = [0, 0], sizes = [6, 64], strides = [1, 1]} : vector<6x256xf32> to vector<6x64xf32>
    %26 = vector.extract_strided_slice %24 {offsets = [0, 64], sizes = [6, 64], strides = [1, 1]} : vector<6x256xf32> to vector<6x64xf32>
    %27 = vector.extract_strided_slice %24 {offsets = [0, 128], sizes = [6, 64], strides = [1, 1]} : vector<6x256xf32> to vector<6x64xf32>
    %28 = vector.extract_strided_slice %24 {offsets = [0, 192], sizes = [6, 64], strides = [1, 1]} : vector<6x256xf32> to vector<6x64xf32>
    %29 = vector.extract_strided_slice %2 {offsets = [2, 0], sizes = [1, 192], strides = [1, 1]} : vector<4x256xf32> to vector<1x192xf32>
    %30 = arith.truncf %1 : vector<6x64xf32> to vector<6x64xbf16>
    %c0_13 = arith.constant 0 : index
    %c0_14 = arith.constant 0 : index
    %31 = vector.load %arg4[%c0_13, %c0_14] : memref<64x192xbf16, #tpu.memory_space<vmem>>, vector<64x192xbf16>
    %cst_15 = arith.constant dense<0.000000e+00> : vector<6x192xf32>
    %32 = tpu.matmul %30, %31, %cst_15 {dimension_numbers = #tpu.dot_dimension_numbers<[1], [0], [0], [1], [0, 0, 1, 1], [], []>} : vector<6x64xbf16>, vector<64x192xbf16>, vector<6x192xf32> -> vector<6x192xf32>
    %33 = vector.broadcast %29 : vector<1x192xf32> to vector<6x192xf32>
    %34 = arith.addf %32, %33 : vector<6x192xf32>
    %35 = vector.extract_strided_slice %34 {offsets = [0, 0], sizes = [6, 64], strides = [1, 1]} : vector<6x192xf32> to vector<6x64xf32>
    %36 = arith.addf %26, %35 : vector<6x64xf32>
    %37 = arith.negf %36 : vector<6x64xf32>
    %38 = math.exp %37 : vector<6x64xf32>
    %cst_16 = arith.constant 1.000000e+00 : f32
    %39 = vector.broadcast %cst_16 : f32 to vector<6x64xf32>
    %40 = arith.addf %39, %38 : vector<6x64xf32>
    %41 = arith.divf %39, %40 : vector<6x64xf32>
    %42 = vector.extract_strided_slice %34 {offsets = [0, 64], sizes = [6, 64], strides = [1, 1]} : vector<6x192xf32> to vector<6x64xf32>
    %43 = arith.addf %27, %42 : vector<6x64xf32>
    %44 = arith.negf %43 : vector<6x64xf32>
    %45 = math.exp %44 : vector<6x64xf32>
    %cst_17 = arith.constant 1.000000e+00 : f32
    %46 = vector.broadcast %cst_17 : f32 to vector<6x64xf32>
    %47 = arith.addf %46, %45 : vector<6x64xf32>
    %48 = arith.divf %46, %47 : vector<6x64xf32>
    %49 = vector.extract_strided_slice %34 {offsets = [0, 128], sizes = [6, 64], strides = [1, 1]} : vector<6x192xf32> to vector<6x64xf32>
    %50 = arith.mulf %41, %49 : vector<6x64xf32>
    %51 = arith.addf %28, %50 : vector<6x64xf32>
    %52 = math.tanh %51 : vector<6x64xf32>
    %cst_18 = arith.constant 1.000000e+00 : f32
    %53 = vector.broadcast %cst_18 : f32 to vector<6x64xf32>
    %54 = arith.subf %53, %48 : vector<6x64xf32>
    %55 = arith.mulf %54, %52 : vector<6x64xf32>
    %56 = arith.mulf %48, %1 : vector<6x64xf32>
    %57 = arith.addf %55, %56 : vector<6x64xf32>
    %58 = vector.extract_strided_slice %2 {offsets = [3, 0], sizes = [1, 56], strides = [1, 1]} : vector<4x256xf32> to vector<1x56xf32>
    %59 = arith.truncf %57 : vector<6x64xf32> to vector<6x64xbf16>
    %c0_19 = arith.constant 0 : index
    %c0_20 = arith.constant 0 : index
    %60 = vector.load %arg5[%c0_19, %c0_20] : memref<64x56xbf16, #tpu.memory_space<vmem>>, vector<64x56xbf16>
    %cst_21 = arith.constant dense<0.000000e+00> : vector<6x56xf32>
    %61 = tpu.matmul %59, %60, %cst_21 {dimension_numbers = #tpu.dot_dimension_numbers<[1], [0], [0], [1], [0, 0, 1, 1], [], []>} : vector<6x64xbf16>, vector<64x56xbf16>, vector<6x56xf32> -> vector<6x56xf32>
    %62 = vector.broadcast %58 : vector<1x56xf32> to vector<6x56xf32>
    %63 = arith.addf %61, %62 : vector<6x56xf32>
    %64 = vector.extract_strided_slice %63 {offsets = [0, 0], sizes = [6, 32], strides = [1, 1]} : vector<6x56xf32> to vector<6x32xf32>
    %65 = vector.extract_strided_slice %63 {offsets = [0, 32], sizes = [6, 24], strides = [1, 1]} : vector<6x56xf32> to vector<6x24xf32>
    %66 = vector.extract_strided_slice %25 {offsets = [0, 0], sizes = [6, 32], strides = [1, 1]} : vector<6x64xf32> to vector<6x32xf32>
    %67 = tpu.iota {dimensions = array<i32: 0>} : vector<32x4xi32>
    %68 = tpu.iota {dimensions = array<i32: 1>} : vector<32x4xi32>
    %c8_i32 = arith.constant 8 : i32
    %69 = vector.broadcast %c8_i32 : i32 to vector<32x4xi32>
    %70 = arith.muli %68, %69 : vector<32x4xi32>
    %71 = arith.cmpi sge, %67, %70 : vector<32x4xi32>
    %c8_i32_22 = arith.constant 8 : i32
    %72 = vector.broadcast %c8_i32_22 : i32 to vector<32x4xi32>
    %73 = arith.addi %70, %72 : vector<32x4xi32>
    %74 = arith.cmpi slt, %67, %73 : vector<32x4xi32>
    %75 = arith.andi %71, %74 : vector<32x4xi1>
    %76 = arith.extui %75 : vector<32x4xi1> to vector<32x4xi32>
    %77 = arith.sitofp %76 : vector<32x4xi32> to vector<32x4xf32>
    %78 = arith.mulf %64, %66 : vector<6x32xf32>
    %cst_23 = arith.constant dense<0.000000e+00> : vector<6x4xf32>
    %79 = tpu.matmul %78, %77, %cst_23 {dimension_numbers = #tpu.dot_dimension_numbers<[1], [0], [0], [1], [0, 0, 1, 1], [], []>} : vector<6x32xf32>, vector<32x4xf32>, vector<6x4xf32> -> vector<6x4xf32>
    %80 = arith.mulf %66, %66 : vector<6x32xf32>
    %cst_24 = arith.constant dense<0.000000e+00> : vector<6x4xf32>
    %81 = tpu.matmul %80, %77, %cst_24 {dimension_numbers = #tpu.dot_dimension_numbers<[1], [0], [0], [1], [0, 0, 1, 1], [], []>} : vector<6x32xf32>, vector<32x4xf32>, vector<6x4xf32> -> vector<6x4xf32>
    %82 = arith.mulf %64, %64 : vector<6x32xf32>
    %cst_25 = arith.constant dense<0.000000e+00> : vector<6x4xf32>
    %83 = tpu.matmul %82, %77, %cst_25 {dimension_numbers = #tpu.dot_dimension_numbers<[1], [0], [0], [1], [0, 0, 1, 1], [], []>} : vector<6x32xf32>, vector<32x4xf32>, vector<6x4xf32> -> vector<6x4xf32>
    %84 = math.sqrt %83 : vector<6x4xf32>
    %cst_26 = arith.constant 9.99999993E-9 : f32
    %85 = vector.broadcast %cst_26 : f32 to vector<6x4xf32>
    %86 = arith.maximumf %84, %85 : vector<6x4xf32>
    %87 = math.sqrt %81 : vector<6x4xf32>
    %cst_27 = arith.constant 9.99999993E-9 : f32
    %88 = vector.broadcast %cst_27 : f32 to vector<6x4xf32>
    %89 = arith.maximumf %87, %88 : vector<6x4xf32>
    %90 = arith.mulf %86, %89 : vector<6x4xf32>
    %91 = arith.divf %79, %90 : vector<6x4xf32>
    %cst_28 = arith.constant dense<0xFF800000> : vector<6xf32>
    %92 = vector.multi_reduction <maximumf>, %91, %cst_28 [1] : vector<6x4xf32> to vector<6xf32>
    %93 = vector.shape_cast %92 : vector<6xf32> to vector<6x1xf32>
    %94 = vector.broadcast %93 : vector<6x1xf32> to vector<6x4xf32>
    %95 = arith.subf %91, %94 : vector<6x4xf32>
    %96 = math.exp %95 : vector<6x4xf32>
    %cst_29 = arith.constant dense<0.000000e+00> : vector<6xf32>
    %97 = vector.multi_reduction <add>, %96, %cst_29 [1] : vector<6x4xf32> to vector<6xf32>
    %98 = vector.shape_cast %97 : vector<6xf32> to vector<6x1xf32>
    %99 = tpu.reciprocal %98 {approx = true} : vector<6x1xf32> -> vector<6x1xf32>
    %100 = vector.broadcast %99 : vector<6x1xf32> to vector<6x4xf32>
    %101 = arith.mulf %96, %100 : vector<6x4xf32>
    %102 = tpu.iota {dimensions = array<i32: 0>} : vector<4x24xi32>
    %103 = tpu.iota {dimensions = array<i32: 1>} : vector<4x24xi32>
    %c6_i32 = arith.constant 6 : i32
    %104 = vector.broadcast %c6_i32 : i32 to vector<4x24xi32>
    %105 = arith.muli %102, %104 : vector<4x24xi32>
    %106 = arith.cmpi sge, %103, %105 : vector<4x24xi32>
    %c6_i32_30 = arith.constant 6 : i32
    %107 = vector.broadcast %c6_i32_30 : i32 to vector<4x24xi32>
    %108 = arith.muli %102, %107 : vector<4x24xi32>
    %c6_i32_31 = arith.constant 6 : i32
    %109 = vector.broadcast %c6_i32_31 : i32 to vector<4x24xi32>
    %110 = arith.addi %108, %109 : vector<4x24xi32>
    %111 = arith.cmpi slt, %103, %110 : vector<4x24xi32>
    %112 = arith.andi %106, %111 : vector<4x24xi1>
    %113 = arith.extui %112 : vector<4x24xi1> to vector<4x24xi32>
    %114 = arith.sitofp %113 : vector<4x24xi32> to vector<4x24xf32>
    %115 = tpu.iota {dimensions = array<i32: 0>} : vector<24x6xi32>
    %116 = tpu.iota {dimensions = array<i32: 1>} : vector<24x6xi32>
    %117 = arith.cmpi eq, %115, %116 : vector<24x6xi32>
    %c6_i32_32 = arith.constant 6 : i32
    %118 = vector.broadcast %c6_i32_32 : i32 to vector<24x6xi32>
    %119 = arith.addi %116, %118 : vector<24x6xi32>
    %120 = arith.cmpi eq, %115, %119 : vector<24x6xi32>
    %121 = arith.ori %117, %120 : vector<24x6xi1>
    %c12_i32 = arith.constant 12 : i32
    %122 = vector.broadcast %c12_i32 : i32 to vector<24x6xi32>
    %123 = arith.addi %116, %122 : vector<24x6xi32>
    %124 = arith.cmpi eq, %115, %123 : vector<24x6xi32>
    %125 = arith.ori %121, %124 : vector<24x6xi1>
    %c18_i32 = arith.constant 18 : i32
    %126 = vector.broadcast %c18_i32 : i32 to vector<24x6xi32>
    %127 = arith.addi %116, %126 : vector<24x6xi32>
    %128 = arith.cmpi eq, %115, %127 : vector<24x6xi32>
    %129 = arith.ori %125, %128 : vector<24x6xi1>
    %130 = arith.extui %129 : vector<24x6xi1> to vector<24x6xi32>
    %131 = arith.sitofp %130 : vector<24x6xi32> to vector<24x6xf32>
    %cst_33 = arith.constant dense<0.000000e+00> : vector<6x24xf32>
    %132 = tpu.matmul %101, %114, %cst_33 {dimension_numbers = #tpu.dot_dimension_numbers<[1], [0], [0], [1], [0, 0, 1, 1], [], []>} : vector<6x4xf32>, vector<4x24xf32>, vector<6x24xf32> -> vector<6x24xf32>
    %133 = arith.mulf %132, %65 : vector<6x24xf32>
    %cst_34 = arith.constant dense<0.000000e+00> : vector<6x6xf32>
    %134 = tpu.matmul %133, %131, %cst_34 {dimension_numbers = #tpu.dot_dimension_numbers<[1], [0], [0], [1], [0, 0, 1, 1], [], []>} : vector<6x24xf32>, vector<24x6xf32>, vector<6x6xf32> -> vector<6x6xf32>
    %cst_35 = arith.constant 0.000000e+00 : f32
    %135 = vector.broadcast %cst_35 : f32 to vector<6x118xf32>
    %136 = tpu.concatenate %57, %25, %134, %91, %135 in 1 : vector<6x64xf32>, vector<6x64xf32>, vector<6x6xf32>, vector<6x4xf32>, vector<6x118xf32> -> vector<6x256xf32>
    %c0_36 = arith.constant 0 : index
    %c0_37 = arith.constant 0 : index
    %137 = vector.load %arg7[%c0_36, %c0_37] : memref<6x256xf32, #tpu.memory_space<vmem>>, vector<6x256xf32>
    tpu.vector_store %arg7[%c0_36, %c0_37], %136 {strides = array<i32>} : memref<6x256xf32, #tpu.memory_space<vmem>>, vector<6x256xf32>,
    return
  }
}

</mosaic_0001>

<llo_original>
// kernel: tpu_custom_call.1
$region0: #{tpu_custom_call.1}
  #allocation0 [shape = 'u32[]', space=smem, size = 0x4, offset = 0x4, fixed_abs, tag = 'smem constant byte address 0x4 - core index']
  #allocation1 [shape = 'u32[144,128]{1,0:T(1,128)}', space=vmem, size = 0x12000, scoped, tag = 'internal scratch']
  %s0 = inlined_call_operand.vmem [shape: f32[6,16], index: 0, kind: input, shape index: {}]
  %s1 = inlined_call_operand.hbm [shape: f32[6,64], index: 1, kind: input, shape index: {}]
  %s2 = inlined_call_operand.hbm [shape: bf16[16,96], index: 2, kind: input, shape index: {}]
  %s3 = inlined_call_operand.hbm [shape: bf16[96,256], index: 3, kind: input, shape index: {}]
  %s4 = inlined_call_operand.vmem [shape: bf16[64,192], index: 4, kind: input, shape index: {}]
  %s5 = inlined_call_operand.vmem [shape: bf16[64,56], index: 5, kind: input, shape index: {}]
  %s6 = inlined_call_operand.vmem [shape: f32[4,256], index: 6, kind: input, shape index: {}]
  %s7 = inlined_call_operand.hbm [shape: f32[6,256], index: 7, kind: output, shape index: {}]
  %s8 = sld [smem:[#allocation0]]
  $region50: #{tpu_custom_call.1} parent=0
    _
  %s10 = ssub.s32 1, %s8
  %s11 = scalar_select 0, %s10, %s8
  $region1: #{tpu_custom_call.1} parent=0
    #allocation2 [shape = 'u8[4096]{0}', space=vmem, size = 0x1000, scoped, tag = 'input window, operand 1, single buffered']
    #allocation3 [shape = 's32[1]{0}', space=sflag, size = 0x4, scoped, tag = 'scoped memory for tpu_custom_call.1']
    #allocation4 [shape = 's32[1]{0}', space=sflag, size = 0x4, scoped, tag = 'scoped memory for tpu_custom_call.1']
    #allocation5 [shape = 'u8[4096]{0}', space=vmem, size = 0x1000, scoped, tag = 'input window, operand 2, single buffered']
    #allocation6 [shape = 's32[1]{0}', space=sflag, size = 0x4, scoped, tag = 'scoped memory for tpu_custom_call.1']
    #allocation7 [shape = 'u8[49152]{0}', space=vmem, size = 0xc000, scoped, tag = 'input window, operand 3, single buffered']
    #allocation8 [shape = 'u8[8192]{0}', space=vmem, size = 0x2000, scoped, tag = 'output window, operand 0, single buffered']
    %12 = vsyncpa [#allocation3], 0
    %13 = vsyncpa [#allocation6], 0
    %14 = vsyncpa [#allocation4], 0
    // Predicated region
    $region2: #{tpu_custom_call.1} parent=1 // pred_check
      _
    $region3: #{tpu_custom_call.1} parent=1 // pred_check_branch
      %16 = sbr.rel (0) target = $region5
    $region4: #{tpu_custom_call.1} parent=1 // pred_region
      _
    $region5: #{tpu_custom_call.1} parent=1 // pred_fallthru
      _
    // Predicated region
    $region6: #{tpu_custom_call.1} parent=1 // pred_check
      _
    $region7: #{tpu_custom_call.1} parent=1 // pred_check_branch
      %18 = sbr.rel (0) target = $region9
    $region8: #{tpu_custom_call.1} parent=1 // pred_region
      %s20 = ssub.s32 128, 128
      %21 = vsyncadd [#allocation3], %s20
      %s23 = sshll.u32 [#allocation2], 4
      %s24 = int_to_ptr.vmem [resolvable:$true] %s23
      %26 = dma.hbm_to_vmem [thread:$0]  %s1, 128, %s24, [#allocation3]
    $region9: #{tpu_custom_call.1} parent=1 // pred_fallthru
      _
    // Predicated region
    $region10: #{tpu_custom_call.1} parent=1 // pred_check
      _
    $region11: #{tpu_custom_call.1} parent=1 // pred_check_branch
      %28 = sbr.rel (0) target = $region13
    $region12: #{tpu_custom_call.1} parent=1 // pred_region
      %s30 = ssub.s32 128, 128
      %31 = vsyncadd [#allocation6], %s30
      %s32 = sshll.u32 [#allocation5], 4
      %s33 = int_to_ptr.vmem [resolvable:$true] %s32
      %38 = dma.hbm_to_vmem [thread:$0]  %s2, 128, %s33, [#allocation6], 64, 64, 4
    $region13: #{tpu_custom_call.1} parent=1 // pred_fallthru
      _
    // Predicated region
    $region14: #{tpu_custom_call.1} parent=1 // pred_check
      _
    $region15: #{tpu_custom_call.1} parent=1 // pred_check_branch
      %40 = sbr.rel (0) target = $region17
    $region16: #{tpu_custom_call.1} parent=1 // pred_region
      %s42 = ssub.s32 1536, 1536
      %43 = vsyncadd [#allocation6], %s42
      %s44 = sshll.u32 [#allocation7], 4
      %s45 = int_to_ptr.vmem [resolvable:$true] %s44
      %50 = dma.hbm_to_vmem [thread:$0]  %s3, 1536, %s45, [#allocation6], 128, 128, 8
    $region17: #{tpu_custom_call.1} parent=1 // pred_fallthru
      _
    // Predicated region
    $region18: #{tpu_custom_call.1} parent=1 // pred_check
      _
    $region19: #{tpu_custom_call.1} parent=1 // pred_check_branch
      %52 = sbr.rel (0) target = $region21
    $region20: #{tpu_custom_call.1} parent=1 // pred_region
      _
    $region21: #{tpu_custom_call.1} parent=1 // pred_fallthru
      _
    // Predicated region
    $region22: #{tpu_custom_call.1} parent=1 // pred_check
      _
    $region23: #{tpu_custom_call.1} parent=1 // pred_check_branch
      %54 = sbr.rel (0) target = $region25
    $region24: #{tpu_custom_call.1} parent=1 // pred_region
      _
    $region25: #{tpu_custom_call.1} parent=1 // pred_fallthru
      _
    // Predicated region
    $region26: #{tpu_custom_call.1} parent=1 // pred_check
      _
    $region27: #{tpu_custom_call.1} parent=1 // pred_check_branch
      %56 = sbr.rel (0) target = $region29
    $region28: #{tpu_custom_call.1} parent=1 // pred_region
      _
    $region29: #{tpu_custom_call.1} parent=1 // pred_fallthru
      _
    // Predicated region
    $region30: #{tpu_custom_call.1} parent=1 // pred_check
      _
    $region31: #{tpu_custom_call.1} parent=1 // pred_check_branch
      %58 = sbr.rel (0) target = $region33
    $region32: #{tpu_custom_call.1} parent=1 // pred_region
      %59 = dma.done [#allocation3], 128
    $region33: #{tpu_custom_call.1} parent=1 // pred_fallthru
      _
    // Predicated region
    $region34: #{tpu_custom_call.1} parent=1 // pred_check
      _
    $region35: #{tpu_custom_call.1} parent=1 // pred_check_branch
      %61 = sbr.rel (0) target = $region37
    $region36: #{tpu_custom_call.1} parent=1 // pred_region
      %62 = dma.done [#allocation6], 128
    $region37: #{tpu_custom_call.1} parent=1 // pred_fallthru
      _
    // Predicated region
    $region38: #{tpu_custom_call.1} parent=1 // pred_check
      _
    $region39: #{tpu_custom_call.1} parent=1 // pred_check_branch
      %64 = sbr.rel (0) target = $region41
    $region40: #{tpu_custom_call.1} parent=1 // pred_region
      %65 = dma.done [#allocation6], 1536
    $region41: #{tpu_custom_call.1} parent=1 // pred_fallthru
      _
    %v67 = vld [vmem:[%s0] sm:$0x3f]
    %v68 = vld [vmem:[#allocation2] sm:$0x3f]
    %v69 = vld [vmem:[%s6] sm:$0xff]
    %v70 = vpack.c.bf16 %v67, %v67
    %v71 = vld [vmem:[#allocation5] sm:$0xf]
    %v72 = vld [vmem:[#allocation5 + $0x4] sm:$0xf]
    %v73 = vlaneseq
    %v74 = vshrl.u32 %v73, 7
    %v75 = vsub.s32 0, %v74
    %v76 = vrot.slane %v69, %v75
    %v79 = vunpack.c.l.b16 %v71
    %v80 = vunpack.c.l.b16 %v72
    %v81 = vpack.c.b16 %v80, %v79
    %vm83 = vcmask 130048
    %v85 = vsel %vm83, %v70, 0
    %87 = vmatprep.subr.bf16.mxu0 0
    %88 = vmatpush1.bf16.msra.mxu0 %v81
    %89 = vmatprep.subr.bf16.mxu0 0
    %90 = vmatpush1.bf16.msra.mxu0 0
    %91 = vmatprep.subr.bf16.mxu0 0
    %92 = vmatpush1.bf16.msra.mxu0 0
    %93 = vmatprep.subr.bf16.mxu0 0
    %94 = vmatpush1.bf16.msra.mxu0 0
    %95 = vmatprep.subr.bf16.mxu0 0
    %96 = vmatpush1.bf16.msra.mxu0 0
    %97 = vmatprep.subr.bf16.mxu0 0
    %98 = vmatpush1.bf16.msra.mxu0 0
    %99 = vmatprep.subr.bf16.mxu0 0
    %100 = vmatpush1.bf16.msra.mxu0 0
    %101 = vmatprep.subr.bf16.mxu0 0
    %102 = vmatpush1.bf16.msra.mxu0 0
    %103 = vmatprep.subr.bf16.mxu0 0
    %104 = vmatpush1.bf16.msra.mxu0 0
    %105 = vmatprep.subr.bf16.mxu0 0
    %106 = vmatpush1.bf16.msra.mxu0 0
    %107 = vmatprep.subr.bf16.mxu0 0
    %108 = vmatpush1.bf16.msra.mxu0 0
    %109 = vmatprep.subr.bf16.mxu0 0
    %110 = vmatpush1.bf16.msra.mxu0 0
    %111 = vmatprep.subr.bf16.mxu0 0
    %112 = vmatpush1.bf16.msra.mxu0 0
    %113 = vmatprep.subr.bf16.mxu0 0
    %114 = vmatpush1.bf16.msra.mxu0 0
    %115 = vmatprep.subr.bf16.mxu0 0
    %116 = vmatpush1.bf16.msra.mxu0 0
    %117 = vmatprep.subr.bf16.mxu0 0
    %118 = vmatpush1.bf16.msra.mxu0 0
    %119 = vmatprep.mubr.bf16.mxu0 0
    %120 = vmatmul.mubr.bf16.gmra.mrb[0].mxu0 %v85
    %v121 = vpop.f32.mrb[0].mxu0
    %v122 = vadd.f32 %v76, %v121
    %v123 = vpop.f32.mrb[0].mxu0
    %v124 = vpop.f32.mrb[0].mxu0
    %v125 = vpop.f32.mrb[0].mxu0
    %126 = vdwg.mxu0
    %v127 = vlaneseq
    %v128 = vand.u32 %v127, 127
    %vm129 = vcmp.lt.s32.totalorder %v128, 32
    %v130 = vsel %vm129, 0.01, 0.0
    %vm131 = vcmp.ge.f32.partialorder %v122, 0.0
    %v132 = vmul.f32 %v130, %v122
    %v133 = vsel %vm131, %v122, %v132
    %v134 = vpack.c.bf16 %v133, %v133
    %v135 = vld [vmem:[#allocation7] sm:$0xff]
    %v136 = vld [vmem:[#allocation7 + $0x8] sm:$0xff]
    %v137 = vld [vmem:[#allocation7 + $0x10] sm:$0xff]
    %v138 = vld [vmem:[#allocation7 + $0x18] sm:$0xff]
    %v139 = vld [vmem:[#allocation7 + $0x20] sm:$0xff]
    %v140 = vld [vmem:[#allocation7 + $0x28] sm:$0xff]
    %v141 = vld [vmem:[#allocation7 + $0x30] sm:$0xff]
    %v142 = vld [vmem:[#allocation7 + $0x38] sm:$0xff]
    %v143 = vld [vmem:[#allocation7 + $0x40] sm:$0xff]
    %v144 = vld [vmem:[#allocation7 + $0x48] sm:$0xff]
    %v145 = vld [vmem:[#allocation7 + $0x50] sm:$0xff]
    %v146 = vld [vmem:[#allocation7 + $0x58] sm:$0xff]
    %v148 = vlaneseq
    %v149 = vshrl.u32 %v148, 7
    %v150 = vsub.s32 1, %v149
    %v151 = vrot.slane %v69, %v150
    %v152 = vlaneseq
    %v153 = vshrl.u32 %v152, 7
    %v154 = vsub.s32 5, %v153
    %v155 = vrot.slane %v69, %v154
    %v158 = vlaneseq
    %v159 = vshrl.u32 %v158, 7
    %v160 = vsub.s32 1, %v159
    %v161 = vrot.slane %v151, %v160
    %v162 = vlaneseq
    %v163 = vshrl.u32 %v162, 7
    %v164 = vsub.s32 1, %v163
    %v165 = vrot.slane %v155, %v164
    %v178 = vunpack.c.l.b16 %v135
    %v179 = vunpack.c.h.b16 %v135
    %v180 = vunpack.c.l.b16 %v136
    %v181 = vunpack.c.h.b16 %v136
    %v182 = vunpack.c.l.b16 %v137
    %v183 = vunpack.c.h.b16 %v137
    %v184 = vunpack.c.l.b16 %v138
    %v185 = vunpack.c.h.b16 %v138
    %v186 = vunpack.c.l.b16 %v139
    %v187 = vunpack.c.h.b16 %v139
    %v188 = vunpack.c.l.b16 %v140
    %v189 = vunpack.c.h.b16 %v140
    %v190 = vunpack.c.l.b16 %v141
    %v191 = vunpack.c.h.b16 %v141
    %v192 = vunpack.c.l.b16 %v142
    %v193 = vunpack.c.h.b16 %v142
    %v194 = vunpack.c.l.b16 %v143
    %v195 = vunpack.c.h.b16 %v143
    %v196 = vunpack.c.l.b16 %v144
    %v197 = vunpack.c.h.b16 %v144
    %v198 = vunpack.c.l.b16 %v145
    %v199 = vunpack.c.h.b16 %v145
    %v200 = vunpack.c.l.b16 %v146
    %v201 = vunpack.c.h.b16 %v146
    %v202 = vpack.c.b16 %v180, %v178
    %v203 = vpack.c.b16 %v181, %v179
    %v204 = vpack.c.b16 %v184, %v182
    %v205 = vpack.c.b16 %v185, %v183
    %v206 = vpack.c.b16 %v188, %v186
    %v207 = vpack.c.b16 %v189, %v187
    %v208 = vpack.c.b16 %v192, %v190
    %v209 = vpack.c.b16 %v193, %v191
    %v210 = vpack.c.b16 %v196, %v194
    %v211 = vpack.c.b16 %v197, %v195
    %v212 = vpack.c.b16 %v200, %v198
    %v213 = vpack.c.b16 %v201, %v199
    %vm226 = vcmask 785408
    %v228 = vsel %vm226, %v134, 0
    %230 = vmatprep.subr.bf16.mxu0 %v203
    %231 = vmatpush1.bf16.msra.mxu0 %v202
    %232 = vmatprep.subr.bf16.mxu0 %v205
    %233 = vmatpush1.bf16.msra.mxu0 %v204
    %234 = vmatprep.subr.bf16.mxu0 %v207
    %235 = vmatpush1.bf16.msra.mxu0 %v206
    %236 = vmatprep.subr.bf16.mxu0 %v209
    %237 = vmatpush1.bf16.msra.mxu0 %v208
    %238 = vmatprep.subr.bf16.mxu0 %v211
    %239 = vmatpush1.bf16.msra.mxu0 %v210
    %240 = vmatprep.subr.bf16.mxu0 %v213
    %241 = vmatpush1.bf16.msra.mxu0 %v212
    %242 = vmatprep.subr.bf16.mxu0 0
    %243 = vmatpush1.bf16.msra.mxu0 0
    %244 = vmatprep.subr.bf16.mxu0 0
    %245 = vmatpush1.bf16.msra.mxu0 0
    %246 = vmatprep.subr.bf16.mxu0 0
    %247 = vmatpush1.bf16.msra.mxu0 0
    %248 = vmatprep.subr.bf16.mxu0 0
    %249 = vmatpush1.bf16.msra.mxu0 0
    %250 = vmatprep.subr.bf16.mxu0 0
    %251 = vmatpush1.bf16.msra.mxu0 0
    %252 = vmatprep.subr.bf16.mxu0 0
    %253 = vmatpush1.bf16.msra.mxu0 0
    %254 = vmatprep.subr.bf16.mxu0 0
    %255 = vmatpush1.bf16.msra.mxu0 0
    %256 = vmatprep.subr.bf16.mxu0 0
    %257 = vmatpush1.bf16.msra.mxu0 0
    %258 = vmatprep.subr.bf16.mxu0 0
    %259 = vmatpush1.bf16.msra.mxu0 0
    %260 = vmatprep.subr.bf16.mxu0 0
    %261 = vmatpush1.bf16.msra.mxu0 0
    %262 = vmatprep.mubr.bf16.mxu0 0
    %263 = vmatmul.mubr.bf16.gmra.mrb[0].mxu0 %v228
    %v264 = vpop.f32.mrb[0].mxu0
    %v265 = vadd.f32 %v161, %v264
    %v266 = vpop.f32.mrb[0].mxu0
    %v267 = vadd.f32 %v165, %v266
    %v268 = vpop.f32.mrb[0].mxu0
    %v269 = vpop.f32.mrb[0].mxu0
    %270 = vdwg.mxu0
    %v271 = vpack.c.bf16 %v68, %v68
    %v272 = vld [vmem:[%s4] sm:$0xff]
    %v273 = vld [vmem:[%s4 + $0x8] sm:$0xff]
    %v274 = vld [vmem:[%s4 + $0x10] sm:$0xff]
    %v275 = vld [vmem:[%s4 + $0x18] sm:$0xff]
    %v276 = vld [vmem:[%s4 + $0x20] sm:$0xff]
    %v277 = vld [vmem:[%s4 + $0x28] sm:$0xff]
    %v278 = vld [vmem:[%s4 + $0x30] sm:$0xff]
    %v279 = vld [vmem:[%s4 + $0x38] sm:$0xff]
    %v280 = vlaneseq
    %v281 = vshrl.u32 %v280, 7
    %v282 = vsub.s32 2, %v281
    %v283 = vrot.slane %v69, %v282
    %v284 = vlaneseq
    %v285 = vshrl.u32 %v284, 7
    %v286 = vsub.s32 6, %v285
    %v287 = vrot.slane %v69, %v286
    %v290 = vlaneseq
    %v291 = vshrl.u32 %v290, 7
    %v292 = vsub.s32 2, %v291
    %v293 = vrot.slane %v283, %v292
    %v294 = vlaneseq
    %v295 = vshrl.u32 %v294, 7
    %v296 = vsub.s32 2, %v295
    %v297 = vrot.slane %v287, %v296
    %v306 = vunpack.c.l.b16 %v272
    %v307 = vunpack.c.h.b16 %v272
    %v308 = vunpack.c.l.b16 %v273
    %v309 = vunpack.c.h.b16 %v273
    %v310 = vunpack.c.l.b16 %v274
    %v311 = vunpack.c.h.b16 %v274
    %v312 = vunpack.c.l.b16 %v275
    %v313 = vunpack.c.h.b16 %v275
    %v314 = vunpack.c.l.b16 %v276
    %v315 = vunpack.c.h.b16 %v276
    %v316 = vunpack.c.l.b16 %v277
    %v317 = vunpack.c.h.b16 %v277
    %v318 = vunpack.c.l.b16 %v278
    %v319 = vunpack.c.h.b16 %v278
    %v320 = vunpack.c.l.b16 %v279
    %v321 = vunpack.c.h.b16 %v279
    %v322 = vpack.c.b16 %v308, %v306
    %v323 = vpack.c.b16 %v309, %v307
    %v324 = vpack.c.b16 %v312, %v310
    %v325 = vpack.c.b16 %v313, %v311
    %v326 = vpack.c.b16 %v316, %v314
    %v327 = vpack.c.b16 %v317, %v315
    %v328 = vpack.c.b16 %v320, %v318
    %v329 = vpack.c.b16 %v321, %v319
    %vm338 = vcmask 523264
    %v340 = vsel %vm338, %v271, 0
    %342 = vmatprep.subr.bf16.mxu0 %v323
    %343 = vmatpush1.bf16.msra.mxu0 %v322
    %344 = vmatprep.subr.bf16.mxu0 %v325
    %345 = vmatpush1.bf16.msra.mxu0 %v324
    %346 = vmatprep.subr.bf16.mxu0 %v327
    %347 = vmatpush1.bf16.msra.mxu0 %v326
    %348 = vmatprep.subr.bf16.mxu0 %v329
    %349 = vmatpush1.bf16.msra.mxu0 %v328
    %350 = vmatprep.subr.bf16.mxu0 0
    %351 = vmatpush1.bf16.msra.mxu0 0
    %352 = vmatprep.subr.bf16.mxu0 0
    %353 = vmatpush1.bf16.msra.mxu0 0
    %354 = vmatprep.subr.bf16.mxu0 0
    %355 = vmatpush1.bf16.msra.mxu0 0
    %356 = vmatprep.subr.bf16.mxu0 0
    %357 = vmatpush1.bf16.msra.mxu0 0
    %358 = vmatprep.subr.bf16.mxu0 0
    %359 = vmatpush1.bf16.msra.mxu0 0
    %360 = vmatprep.subr.bf16.mxu0 0
    %361 = vmatpush1.bf16.msra.mxu0 0
    %362 = vmatprep.subr.bf16.mxu0 0
    %363 = vmatpush1.bf16.msra.mxu0 0
    %364 = vmatprep.subr.bf16.mxu0 0
    %365 = vmatpush1.bf16.msra.mxu0 0
    %366 = vmatprep.subr.bf16.mxu0 0
    %367 = vmatpush1.bf16.msra.mxu0 0
    %368 = vmatprep.subr.bf16.mxu0 0
    %369 = vmatpush1.bf16.msra.mxu0 0
    %370 = vmatprep.subr.bf16.mxu0 0
    %371 = vmatpush1.bf16.msra.mxu0 0
    %372 = vmatprep.subr.bf16.mxu0 0
    %373 = vmatpush1.bf16.msra.mxu0 0
    %374 = vmatprep.mubr.bf16.mxu0 0
    %375 = vmatmul.mubr.bf16.gmra.mrb[0].mxu0 %v340
    %v376 = vpop.f32.mrb[0].mxu0
    %v377 = vadd.f32 %v293, %v376
    %v378 = vpop.f32.mrb[0].mxu0
    %v379 = vadd.f32 %v297, %v378
    %v380 = vpop.f32.mrb[0].mxu0
    %v381 = vpop.f32.mrb[0].mxu0
    %382 = vdwg.mxu0
    %384 = vrot.lane.b32.xlu0 %v377, 64
    %v385 = vpop.permute.xlu0 %384
    %v387 = vadd.f32 %v265, %v385
    %v388 = vxor.u32 %v387, 2147483648
    %v389 = vmul.f32 %v388, 1.442695
    %v390 = vpow.pop %v389
    %v391 = vadd.f32 %v390, 1.0
    %v392 = vrcp.pop %v391
    %v393 = vmul.f32 1.0, %v392
    %v394 = vadd.f32 %v267, %v385
    %v395 = vxor.u32 %v394, 2147483648
    %v396 = vmul.f32 %v395, 1.442695
    %v397 = vpow.pop %v396
    %v398 = vadd.f32 %v397, 1.0
    %v399 = vrcp.pop %v398
    %v400 = vmul.f32 1.0, %v399
    %402 = vrot.lane.b32.xlu0 %v379, 64
    %v403 = vpop.permute.xlu0 %402
    %v405 = vmul.f32 %v393, %v403
    %v406 = vadd.f32 %v267, %v405
    %v407 = vtanh.pop %v406
    %v408 = vsub.f32 1.0, %v400
    %410 = vrot.lane.b32.xlu0 %v407, 64
    %v411 = vpop.permute.xlu0 %410
    %v413 = vmul.f32 %v408, %v411
    %v414 = vmul.f32 %v400, %v68
    %v415 = vadd.f32 %v413, %v414
    %v416 = vpack.c.bf16 %v415, %v415
    %v417 = vld [vmem:[%s5] sm:$0xf]
    %v418 = vld [vmem:[%s5 + $0x4] sm:$0xf]
    %v419 = vld [vmem:[%s5 + $0x8] sm:$0xf]
    %v420 = vld [vmem:[%s5 + $0xc] sm:$0xf]
    %v421 = vld [vmem:[%s5 + $0x10] sm:$0xf]
    %v422 = vld [vmem:[%s5 + $0x14] sm:$0xf]
    %v423 = vld [vmem:[%s5 + $0x18] sm:$0xf]
    %v424 = vld [vmem:[%s5 + $0x1c] sm:$0xf]
    %v425 = vlaneseq
    %v426 = vshrl.u32 %v425, 7
    %v427 = vsub.s32 3, %v426
    %v428 = vrot.slane %v69, %v427
    %v437 = vunpack.c.l.b16 %v417
    %v438 = vunpack.c.l.b16 %v418
    %v439 = vunpack.c.l.b16 %v419
    %v440 = vunpack.c.l.b16 %v420
    %v441 = vunpack.c.l.b16 %v421
    %v442 = vunpack.c.l.b16 %v422
    %v443 = vunpack.c.l.b16 %v423
    %v444 = vunpack.c.l.b16 %v424
    %v445 = vpack.c.b16 %v438, %v437
    %v446 = vpack.c.b16 %v440, %v439
    %v447 = vpack.c.b16 %v442, %v441
    %v448 = vpack.c.b16 %v444, %v443
    %v454 = vsel %vm338, %v416, 0
    %456 = vmatprep.subr.bf16.mxu0 0
    %457 = vmatpush1.bf16.msra.mxu0 %v445
    %458 = vmatprep.subr.bf16.mxu0 0
    %459 = vmatpush1.bf16.msra.mxu0 %v446
    %460 = vmatprep.subr.bf16.mxu0 0
    %461 = vmatpush1.bf16.msra.mxu0 %v447
    %462 = vmatprep.subr.bf16.mxu0 0
    %463 = vmatpush1.bf16.msra.mxu0 %v448
    %464 = vmatprep.subr.bf16.mxu0 0
    %465 = vmatpush1.bf16.msra.mxu0 0
    %466 = vmatprep.subr.bf16.mxu0 0
    %467 = vmatpush1.bf16.msra.mxu0 0
    %468 = vmatprep.subr.bf16.mxu0 0
    %469 = vmatpush1.bf16.msra.mxu0 0
    %470 = vmatprep.subr.bf16.mxu0 0
    %471 = vmatpush1.bf16.msra.mxu0 0
    %472 = vmatprep.subr.bf16.mxu0 0
    %473 = vmatpush1.bf16.msra.mxu0 0
    %474 = vmatprep.subr.bf16.mxu0 0
    %475 = vmatpush1.bf16.msra.mxu0 0
    %476 = vmatprep.subr.bf16.mxu0 0
    %477 = vmatpush1.bf16.msra.mxu0 0
    %478 = vmatprep.subr.bf16.mxu0 0
    %479 = vmatpush1.bf16.msra.mxu0 0
    %480 = vmatprep.subr.bf16.mxu0 0
    %481 = vmatpush1.bf16.msra.mxu0 0
    %482 = vmatprep.subr.bf16.mxu0 0
    %483 = vmatpush1.bf16.msra.mxu0 0
    %484 = vmatprep.subr.bf16.mxu0 0
    %485 = vmatpush1.bf16.msra.mxu0 0
    %486 = vmatprep.subr.bf16.mxu0 0
    %487 = vmatpush1.bf16.msra.mxu0 0
    %488 = vmatprep.mubr.bf16.mxu0 0
    %489 = vmatmul.mubr.bf16.gmra.mrb[0].mxu0 %v454
    %v490 = vpop.f32.mrb[0].mxu0
    %v491 = vadd.f32 %v428, %v490
    %v492 = vpop.f32.mrb[0].mxu0
    %v493 = vpop.f32.mrb[0].mxu0
    %v494 = vpop.f32.mrb[0].mxu0
    %495 = vdwg.mxu0
    %v496 = vlaneseq
    %v497 = vshrl.u32 %v496, 7
    %v498 = vadd.s32 %v497, 8
    %v499 = vadd.s32 %v497, 16
    %v500 = vadd.s32 %v497, 24
    %v501 = vmul.u32 %v128, 8
    %vm502 = vcmp.ge.s32.totalorder %v497, %v501
    %vm503 = vcmp.ge.s32.totalorder %v498, %v501
    %vm504 = vcmp.ge.s32.totalorder %v499, %v501
    %vm505 = vcmp.ge.s32.totalorder %v500, %v501
    %v506 = vadd.s32 %v501, 8
    %vm507 = vcmp.lt.s32.totalorder %v497, %v506
    %vm508 = vcmp.lt.s32.totalorder %v498, %v506
    %vm509 = vcmp.lt.s32.totalorder %v499, %v506
    %vm510 = vcmp.lt.s32.totalorder %v500, %v506
    %vm511 = vmand %vm502, %vm507
    %vm512 = vmand %vm503, %vm508
    %vm513 = vmand %vm504, %vm509
    %vm514 = vmand %vm505, %vm510
    %v515 = vsel %vm511, 1, 0
    %v516 = vsel %vm512, 1, 0
    %v517 = vsel %vm513, 1, 0
    %v518 = vsel %vm514, 1, 0
    %v519 = vcvt.s32.f32 %v515
    %v520 = vcvt.s32.f32 %v516
    %v521 = vcvt.s32.f32 %v517
    %v522 = vcvt.s32.f32 %v518
    %v523 = vmul.f32 %v491, %v265
    %vm524 = vcmask 261120
    %v526 = vsel %vm524, %v523, 0
    %528 = vmatprep.subr.mxu0 0.0
    %529 = vmatpush1.msra.mxu0 %v519
    %530 = vmatprep.subr.mxu0 0.0
    %531 = vmatpush1.msra.mxu0 %v520
    %532 = vmatprep.subr.mxu0 0.0
    %533 = vmatpush1.msra.mxu0 %v521
    %534 = vmatprep.subr.mxu0 0.0
    %535 = vmatpush1.msra.mxu0 %v522
    %536 = vmatprep.subr.mxu0 0.0
    %537 = vmatpush1.msra.mxu0 0.0
    %538 = vmatprep.subr.mxu0 0.0
    %539 = vmatpush1.msra.mxu0 0.0
    %540 = vmatprep.subr.mxu0 0.0
    %541 = vmatpush1.msra.mxu0 0.0
    %542 = vmatprep.subr.mxu0 0.0
    %543 = vmatpush1.msra.mxu0 0.0
    %544 = vmatprep.subr.mxu0 0.0
    %545 = vmatpush1.msra.mxu0 0.0
    %546 = vmatprep.subr.mxu0 0.0
    %547 = vmatpush1.msra.mxu0 0.0
    %548 = vmatprep.subr.mxu0 0.0
    %549 = vmatpush1.msra.mxu0 0.0
    %550 = vmatprep.subr.mxu0 0.0
    %551 = vmatpush1.msra.mxu0 0.0
    %552 = vmatprep.subr.mxu0 0.0
    %553 = vmatpush1.msra.mxu0 0.0
    %554 = vmatprep.subr.mxu0 0.0
    %555 = vmatpush1.msra.mxu0 0.0
    %556 = vmatprep.subr.mxu0 0.0
    %557 = vmatpush1.msra.mxu0 0.0
    %558 = vmatprep.subr.mxu0 0.0
    %559 = vmatpush1.msra.mxu0 0.0
    %560 = vmatprep.subr.mxu0 0.0
    %561 = vmatpush1.msra.mxu0 0.0
    %562 = vmatprep.subr.mxu0 0.0
    %563 = vmatpush1.msra.mxu0 0.0
    %564 = vmatprep.subr.mxu0 0.0
    %565 = vmatpush1.msra.mxu0 0.0
    %566 = vmatprep.subr.mxu0 0.0
    %567 = vmatpush1.msra.mxu0 0.0
    %568 = vmatprep.subr.mxu0 0.0
    %569 = vmatpush1.msra.mxu0 0.0
    %570 = vmatprep.subr.mxu0 0.0
    %571 = vmatpush1.msra.mxu0 0.0
    %572 = vmatprep.subr.mxu0 0.0
    %573 = vmatpush1.msra.mxu0 0.0
    %574 = vmatprep.subr.mxu0 0.0
    %575 = vmatpush1.msra.mxu0 0.0
    %576 = vmatprep.subr.mxu0 0.0
    %577 = vmatpush1.msra.mxu0 0.0
    %578 = vmatprep.subr.mxu0 0.0
    %579 = vmatpush1.msra.mxu0 0.0
    %580 = vmatprep.subr.mxu0 0.0
    %581 = vmatpush1.msra.mxu0 0.0
    %582 = vmatprep.subr.mxu0 0.0
    %583 = vmatpush1.msra.mxu0 0.0
    %584 = vmatprep.subr.mxu0 0.0
    %585 = vmatpush1.msra.mxu0 0.0
    %586 = vmatprep.subr.mxu0 0.0
    %587 = vmatpush1.msra.mxu0 0.0
    %588 = vmatprep.subr.mxu0 0.0
    %589 = vmatpush1.msra.mxu0 0.0
    %590 = vmatprep.subr.mxu0 0.0
    %591 = vmatpush1.msra.mxu0 0.0
    %592 = vmatprep.mubr.f32.mxu0 0.0
    %593 = vmatmul.mubr.f32.gmra.mrb[0].mxu0 %v526
    %v594 = vpop.f32.mrb[0].mxu0
    %v595 = vadd.f32 0.0, %v594
    %v596 = vpop.f32.mrb[0].mxu0
    %597 = vdwg.mxu0
    %v598 = vmul.f32 %v265, %v265
    %v600 = vsel %vm524, %v598, 0
    %602 = vmatprep.subr.mxu0 0.0
    %603 = vmatpush1.msra.mxu0 %v519
    %604 = vmatprep.subr.mxu0 0.0
    %605 = vmatpush1.msra.mxu0 %v520
    %606 = vmatprep.subr.mxu0 0.0
    %607 = vmatpush1.msra.mxu0 %v521
    %608 = vmatprep.subr.mxu0 0.0
    %609 = vmatpush1.msra.mxu0 %v522
    %610 = vmatprep.subr.mxu0 0.0
    %611 = vmatpush1.msra.mxu0 0.0
    %612 = vmatprep.subr.mxu0 0.0
    %613 = vmatpush1.msra.mxu0 0.0
    %614 = vmatprep.subr.mxu0 0.0
    %615 = vmatpush1.msra.mxu0 0.0
    %616 = vmatprep.subr.mxu0 0.0
    %617 = vmatpush1.msra.mxu0 0.0
    %618 = vmatprep.subr.mxu0 0.0
    %619 = vmatpush1.msra.mxu0 0.0
    %620 = vmatprep.subr.mxu0 0.0
    %621 = vmatpush1.msra.mxu0 0.0
    %622 = vmatprep.subr.mxu0 0.0
    %623 = vmatpush1.msra.mxu0 0.0
    %624 = vmatprep.subr.mxu0 0.0
    %625 = vmatpush1.msra.mxu0 0.0
    %626 = vmatprep.subr.mxu0 0.0
    %627 = vmatpush1.msra.mxu0 0.0
    %628 = vmatprep.subr.mxu0 0.0
    %629 = vmatpush1.msra.mxu0 0.0
    %630 = vmatprep.subr.mxu0 0.0
    %631 = vmatpush1.msra.mxu0 0.0
    %632 = vmatprep.subr.mxu0 0.0
    %633 = vmatpush1.msra.mxu0 0.0
    %634 = vmatprep.subr.mxu0 0.0
    %635 = vmatpush1.msra.mxu0 0.0
    %636 = vmatprep.subr.mxu0 0.0
    %637 = vmatpush1.msra.mxu0 0.0
    %638 = vmatprep.subr.mxu0 0.0
    %639 = vmatpush1.msra.mxu0 0.0
    %640 = vmatprep.subr.mxu0 0.0
    %641 = vmatpush1.msra.mxu0 0.0
    %642 = vmatprep.subr.mxu0 0.0
    %643 = vmatpush1.msra.mxu0 0.0
    %644 = vmatprep.subr.mxu0 0.0
    %645 = vmatpush1.msra.mxu0 0.0
    %646 = vmatprep.subr.mxu0 0.0
    %647 = vmatpush1.msra.mxu0 0.0
    %648 = vmatprep.subr.mxu0 0.0
    %649 = vmatpush1.msra.mxu0 0.0
    %650 = vmatprep.subr.mxu0 0.0
    %651 = vmatpush1.msra.mxu0 0.0
    %652 = vmatprep.subr.mxu0 0.0
    %653 = vmatpush1.msra.mxu0 0.0
    %654 = vmatprep.subr.mxu0 0.0
    %655 = vmatpush1.msra.mxu0 0.0
    %656 = vmatprep.subr.mxu0 0.0
    %657 = vmatpush1.msra.mxu0 0.0
    %658 = vmatprep.subr.mxu0 0.0
    %659 = vmatpush1.msra.mxu0 0.0
    %660 = vmatprep.subr.mxu0 0.0
    %661 = vmatpush1.msra.mxu0 0.0
    %662 = vmatprep.subr.mxu0 0.0
    %663 = vmatpush1.msra.mxu0 0.0
    %664 = vmatprep.subr.mxu0 0.0
    %665 = vmatpush1.msra.mxu0 0.0
    %666 = vmatprep.mubr.f32.mxu0 0.0
    %667 = vmatmul.mubr.f32.gmra.mrb[0].mxu0 %v600
    %v668 = vpop.f32.mrb[0].mxu0
    %v669 = vadd.f32 0.0, %v668
    %v670 = vpop.f32.mrb[0].mxu0
    %671 = vdwg.mxu0
    %v672 = vmul.f32 %v491, %v491
    %v674 = vsel %vm524, %v672, 0
    %676 = vmatprep.subr.mxu0 0.0
    %677 = vmatpush1.msra.mxu0 %v519
    %678 = vmatprep.subr.mxu0 0.0
    %679 = vmatpush1.msra.mxu0 %v520
    %680 = vmatprep.subr.mxu0 0.0
    %681 = vmatpush1.msra.mxu0 %v521
    %682 = vmatprep.subr.mxu0 0.0
    %683 = vmatpush1.msra.mxu0 %v522
    %684 = vmatprep.subr.mxu0 0.0
    %685 = vmatpush1.msra.mxu0 0.0
    %686 = vmatprep.subr.mxu0 0.0
    %687 = vmatpush1.msra.mxu0 0.0
    %688 = vmatprep.subr.mxu0 0.0
    %689 = vmatpush1.msra.mxu0 0.0
    %690 = vmatprep.subr.mxu0 0.0
    %691 = vmatpush1.msra.mxu0 0.0
    %692 = vmatprep.subr.mxu0 0.0
    %693 = vmatpush1.msra.mxu0 0.0
    %694 = vmatprep.subr.mxu0 0.0
    %695 = vmatpush1.msra.mxu0 0.0
    %696 = vmatprep.subr.mxu0 0.0
    %697 = vmatpush1.msra.mxu0 0.0
    %698 = vmatprep.subr.mxu0 0.0
    %699 = vmatpush1.msra.mxu0 0.0
    %700 = vmatprep.subr.mxu0 0.0
    %701 = vmatpush1.msra.mxu0 0.0
    %702 = vmatprep.subr.mxu0 0.0
    %703 = vmatpush1.msra.mxu0 0.0
    %704 = vmatprep.subr.mxu0 0.0
    %705 = vmatpush1.msra.mxu0 0.0
    %706 = vmatprep.subr.mxu0 0.0
    %707 = vmatpush1.msra.mxu0 0.0
    %708 = vmatprep.subr.mxu0 0.0
    %709 = vmatpush1.msra.mxu0 0.0
    %710 = vmatprep.subr.mxu0 0.0
    %711 = vmatpush1.msra.mxu0 0.0
    %712 = vmatprep.subr.mxu0 0.0
    %713 = vmatpush1.msra.mxu0 0.0
    %714 = vmatprep.subr.mxu0 0.0
    %715 = vmatpush1.msra.mxu0 0.0
    %716 = vmatprep.subr.mxu0 0.0
    %717 = vmatpush1.msra.mxu0 0.0
    %718 = vmatprep.subr.mxu0 0.0
    %719 = vmatpush1.msra.mxu0 0.0
    %720 = vmatprep.subr.mxu0 0.0
    %721 = vmatpush1.msra.mxu0 0.0
    %722 = vmatprep.subr.mxu0 0.0
    %723 = vmatpush1.msra.mxu0 0.0
    %724 = vmatprep.subr.mxu0 0.0
    %725 = vmatpush1.msra.mxu0 0.0
    %726 = vmatprep.subr.mxu0 0.0
    %727 = vmatpush1.msra.mxu0 0.0
    %728 = vmatprep.subr.mxu0 0.0
    %729 = vmatpush1.msra.mxu0 0.0
    %730 = vmatprep.subr.mxu0 0.0
    %731 = vmatpush1.msra.mxu0 0.0
    %732 = vmatprep.subr.mxu0 0.0
    %733 = vmatpush1.msra.mxu0 0.0
    %734 = vmatprep.subr.mxu0 0.0
    %735 = vmatpush1.msra.mxu0 0.0
    %736 = vmatprep.subr.mxu0 0.0
    %737 = vmatpush1.msra.mxu0 0.0
    %738 = vmatprep.subr.mxu0 0.0
    %739 = vmatpush1.msra.mxu0 0.0
    %740 = vmatprep.mubr.f32.mxu0 0.0
    %741 = vmatmul.mubr.f32.gmra.mrb[0].mxu0 %v674
    %v742 = vpop.f32.mrb[0].mxu0
    %v743 = vadd.f32 0.0, %v742
    %v744 = vpop.f32.mrb[0].mxu0
    %745 = vdwg.mxu0
    %v746 = vrsqrt.pop %v743
    %v747 = vmul.f32 %v743, %v746
    %vm748 = vcmp.eq.f32.partialorder %v743, inf
    %v749 = vsel %vm748, %v743, %v747
    %vm750 = vcmp.eq.f32.partialorder %v743, 0.0
    %v751 = vand.u32 %v743, 2147483648
    %v752 = vsel %vm750, %v751, %v749
    %v753 = vmax.f32 %v752, 1e-08
    %v754 = vrsqrt.pop %v669
    %v755 = vmul.f32 %v669, %v754
    %vm756 = vcmp.eq.f32.partialorder %v669, inf
    %v757 = vsel %vm756, %v669, %v755
    %vm758 = vcmp.eq.f32.partialorder %v669, 0.0
    %v759 = vand.u32 %v669, 2147483648
    %v760 = vsel %vm758, %v759, %v757
    %v761 = vmax.f32 %v760, 1e-08
    %v762 = vmul.f32 %v753, %v761
    %v763 = vrcp.pop %v762
    %v764 = vmul.f32 %v595, %v763
    %vm765 = vcmask 29696
    %v766 = vsel %vm765, %v764, -inf
    %767 = vmax.xlane.f32.xlu0 %v766
    %v768 = vpop.xlane.xlu0 %767
    %v769 = vsub.f32 %v764, %v768
    %v770 = vmul.f32 %v769, 1.442695
    %v771 = vpow.pop %v770
    %v772 = vsel %vm765, %v771, 0.0
    %773 = vadd.xlane.f32.xlu0 %v772
    %v774 = vpop.xlane.xlu0 %773
    %v775 = vrcp.pop %v774
    %v776 = vmul.f32 %v771, %v775
    %v777 = vmul.u32 %v497, 6
    %vm778 = vcmp.ge.s32.totalorder %v128, %v777
    %v779 = vadd.s32 %v777, 6
    %vm780 = vcmp.lt.s32.totalorder %v128, %v779
    %vm781 = vmand %vm778, %vm780
    %v782 = vsel %vm781, 1, 0
    %v783 = vcvt.s32.f32 %v782
    %vm784 = vcmp.eq.s32.totalorder %v497, %v128
    %vm785 = vcmp.eq.s32.totalorder %v498, %v128
    %vm786 = vcmp.eq.s32.totalorder %v499, %v128
    %v787 = vadd.s32 %v128, 6
    %vm788 = vcmp.eq.s32.totalorder %v497, %v787
    %vm789 = vcmp.eq.s32.totalorder %v498, %v787
    %vm790 = vcmp.eq.s32.totalorder %v499, %v787
    %vm791 = vmor %vm784, %vm788
    %vm792 = vmor %vm785, %vm789
    %vm793 = vmor %vm786, %vm790
    %v794 = vadd.s32 %v128, 12
    %vm795 = vcmp.eq.s32.totalorder %v497, %v794
    %vm796 = vcmp.eq.s32.totalorder %v498, %v794
    %vm797 = vcmp.eq.s32.totalorder %v499, %v794
    %vm798 = vmor %vm791, %vm795
    %vm799 = vmor %vm792, %vm796
    %vm800 = vmor %vm793, %vm797
    %v801 = vadd.s32 %v128, 18
    %vm802 = vcmp.eq.s32.totalorder %v497, %v801
    %vm803 = vcmp.eq.s32.totalorder %v498, %v801
    %vm804 = vcmp.eq.s32.totalorder %v499, %v801
    %vm805 = vmor %vm798, %vm802
    %vm806 = vmor %vm799, %vm803
    %vm807 = vmor %vm800, %vm804
    %v808 = vsel %vm805, 1, 0
    %v809 = vsel %vm806, 1, 0
    %v810 = vsel %vm807, 1, 0
    %v811 = vcvt.s32.f32 %v808
    %v812 = vcvt.s32.f32 %v809
    %v813 = vcvt.s32.f32 %v810
    %vm814 = vcmask 31744
    %v816 = vsel %vm814, %v776, 0
    %vm818 = vcmask 1043456
    %v820 = vsel %vm818, %v783, 0
    %822 = vmatprep.subr.mxu0 0.0
    %823 = vmatpush1.msra.mxu0 %v820
    %824 = vmatprep.subr.mxu0 0.0
    %825 = vmatpush1.msra.mxu0 0.0
    %826 = vmatprep.subr.mxu0 0.0
    %827 = vmatpush1.msra.mxu0 0.0
    %828 = vmatprep.subr.mxu0 0.0
    %829 = vmatpush1.msra.mxu0 0.0
    %830 = vmatprep.subr.mxu0 0.0
    %831 = vmatpush1.msra.mxu0 0.0
    %832 = vmatprep.subr.mxu0 0.0
    %833 = vmatpush1.msra.mxu0 0.0
    %834 = vmatprep.subr.mxu0 0.0
    %835 = vmatpush1.msra.mxu0 0.0
    %836 = vmatprep.subr.mxu0 0.0
    %837 = vmatpush1.msra.mxu0 0.0
    %838 = vmatprep.subr.mxu0 0.0
    %839 = vmatpush1.msra.mxu0 0.0
    %840 = vmatprep.subr.mxu0 0.0
    %841 = vmatpush1.msra.mxu0 0.0
    %842 = vmatprep.subr.mxu0 0.0
    %843 = vmatpush1.msra.mxu0 0.0
    %844 = vmatprep.subr.mxu0 0.0
    %845 = vmatpush1.msra.mxu0 0.0
    %846 = vmatprep.subr.mxu0 0.0
    %847 = vmatpush1.msra.mxu0 0.0
    %848 = vmatprep.subr.mxu0 0.0
    %849 = vmatpush1.msra.mxu0 0.0
    %850 = vmatprep.subr.mxu0 0.0
    %851 = vmatpush1.msra.mxu0 0.0
    %852 = vmatprep.subr.mxu0 0.0
    %853 = vmatpush1.msra.mxu0 0.0
    %854 = vmatprep.subr.mxu0 0.0
    %855 = vmatpush1.msra.mxu0 0.0
    %856 = vmatprep.subr.mxu0 0.0
    %857 = vmatpush1.msra.mxu0 0.0
    %858 = vmatprep.subr.mxu0 0.0
    %859 = vmatpush1.msra.mxu0 0.0
    %860 = vmatprep.subr.mxu0 0.0
    %861 = vmatpush1.msra.mxu0 0.0
    %862 = vmatprep.subr.mxu0 0.0
    %863 = vmatpush1.msra.mxu0 0.0
    %864 = vmatprep.subr.mxu0 0.0
    %865 = vmatpush1.msra.mxu0 0.0
    %866 = vmatprep.subr.mxu0 0.0
    %867 = vmatpush1.msra.mxu0 0.0
    %868 = vmatprep.subr.mxu0 0.0
    %869 = vmatpush1.msra.mxu0 0.0
    %870 = vmatprep.subr.mxu0 0.0
    %871 = vmatpush1.msra.mxu0 0.0
    %872 = vmatprep.subr.mxu0 0.0
    %873 = vmatpush1.msra.mxu0 0.0
    %874 = vmatprep.subr.mxu0 0.0
    %875 = vmatpush1.msra.mxu0 0.0
    %876 = vmatprep.subr.mxu0 0.0
    %877 = vmatpush1.msra.mxu0 0.0
    %878 = vmatprep.subr.mxu0 0.0
    %879 = vmatpush1.msra.mxu0 0.0
    %880 = vmatprep.subr.mxu0 0.0
    %881 = vmatpush1.msra.mxu0 0.0
    %882 = vmatprep.subr.mxu0 0.0
    %883 = vmatpush1.msra.mxu0 0.0
    %884 = vmatprep.subr.mxu0 0.0
    %885 = vmatpush1.msra.mxu0 0.0
    %886 = vmatprep.mubr.f32.mxu0 0.0
    %887 = vmatmul.mubr.f32.gmra.mrb[0].mxu0 %v816
    %v888 = vpop.f32.mrb[0].mxu0
    %v889 = vadd.f32 0.0, %v888
    %v890 = vpop.f32.mrb[0].mxu0
    %891 = vdwg.mxu0
    %893 = vrot.lane.b32.xlu0 %v491, 96
    %v894 = vpop.permute.xlu0 %893
    %v896 = vmul.f32 %v889, %v894
    %vm897 = vcmask 195584
    %v899 = vsel %vm897, %v896, 0
    %901 = vmatprep.subr.mxu0 0.0
    %902 = vmatpush1.msra.mxu0 %v811
    %903 = vmatprep.subr.mxu0 0.0
    %904 = vmatpush1.msra.mxu0 %v812
    %905 = vmatprep.subr.mxu0 0.0
    %906 = vmatpush1.msra.mxu0 %v813
    %907 = vmatprep.subr.mxu0 0.0
    %908 = vmatpush1.msra.mxu0 0.0
    %909 = vmatprep.subr.mxu0 0.0
    %910 = vmatpush1.msra.mxu0 0.0
    %911 = vmatprep.subr.mxu0 0.0
    %912 = vmatpush1.msra.mxu0 0.0
    %913 = vmatprep.subr.mxu0 0.0
    %914 = vmatpush1.msra.mxu0 0.0
    %915 = vmatprep.subr.mxu0 0.0
    %916 = vmatpush1.msra.mxu0 0.0
    %917 = vmatprep.subr.mxu0 0.0
    %918 = vmatpush1.msra.mxu0 0.0
    %919 = vmatprep.subr.mxu0 0.0
    %920 = vmatpush1.msra.mxu0 0.0
    %921 = vmatprep.subr.mxu0 0.0
    %922 = vmatpush1.msra.mxu0 0.0
    %923 = vmatprep.subr.mxu0 0.0
    %924 = vmatpush1.msra.mxu0 0.0
    %925 = vmatprep.subr.mxu0 0.0
    %926 = vmatpush1.msra.mxu0 0.0
    %927 = vmatprep.subr.mxu0 0.0
    %928 = vmatpush1.msra.mxu0 0.0
    %929 = vmatprep.subr.mxu0 0.0
    %930 = vmatpush1.msra.mxu0 0.0
    %931 = vmatprep.subr.mxu0 0.0
    %932 = vmatpush1.msra.mxu0 0.0
    %933 = vmatprep.subr.mxu0 0.0
    %934 = vmatpush1.msra.mxu0 0.0
    %935 = vmatprep.subr.mxu0 0.0
    %936 = vmatpush1.msra.mxu0 0.0
    %937 = vmatprep.subr.mxu0 0.0
    %938 = vmatpush1.msra.mxu0 0.0
    %939 = vmatprep.subr.mxu0 0.0
    %940 = vmatpush1.msra.mxu0 0.0
    %941 = vmatprep.subr.mxu0 0.0
    %942 = vmatpush1.msra.mxu0 0.0
    %943 = vmatprep.subr.mxu0 0.0
    %944 = vmatpush1.msra.mxu0 0.0
    %945 = vmatprep.subr.mxu0 0.0
    %946 = vmatpush1.msra.mxu0 0.0
    %947 = vmatprep.subr.mxu0 0.0
    %948 = vmatpush1.msra.mxu0 0.0
    %949 = vmatprep.subr.mxu0 0.0
    %950 = vmatpush1.msra.mxu0 0.0
    %951 = vmatprep.subr.mxu0 0.0
    %952 = vmatpush1.msra.mxu0 0.0
    %953 = vmatprep.subr.mxu0 0.0
    %954 = vmatpush1.msra.mxu0 0.0
    %955 = vmatprep.subr.mxu0 0.0
    %956 = vmatpush1.msra.mxu0 0.0
    %957 = vmatprep.subr.mxu0 0.0
    %958 = vmatpush1.msra.mxu0 0.0
    %959 = vmatprep.subr.mxu0 0.0
    %960 = vmatpush1.msra.mxu0 0.0
    %961 = vmatprep.subr.mxu0 0.0
    %962 = vmatpush1.msra.mxu0 0.0
    %963 = vmatprep.subr.mxu0 0.0
    %964 = vmatpush1.msra.mxu0 0.0
    %965 = vmatprep.mubr.f32.mxu0 0.0
    %966 = vmatmul.mubr.f32.gmra.mrb[0].mxu0 %v899
    %v967 = vpop.f32.mrb[0].mxu0
    %v968 = vadd.f32 0.0, %v967
    %v969 = vpop.f32.mrb[0].mxu0
    %970 = vdwg.mxu0
    %972 = vrot.lane.b32.xlu0 %v265, 64
    %v973 = vpop.permute.xlu0 %972
    %976 = vrot.lane.b32.xlu0 %v764, 6
    %v977 = vpop.permute.xlu0 %976
    %v979 = vsel %vm338, %v415, %v973
    %vm980 = vcmask 48128
    %v981 = vsel %vm980, %v968, %v977
    %vm982 = vcmask 80896
    %v983 = vsel %vm982, %v981, 0.0
    %984 = vst [vmem:[#allocation8] sm:$0x3f] %v979
    %985 = vst [vmem:[#allocation8 + $0x8] sm:$0x3f] %v983
    // Predicated region
    $region42: #{tpu_custom_call.1} parent=1 // pred_check
      _
    $region43: #{tpu_custom_call.1} parent=1 // pred_check_branch
      %987 = sbr.rel (0) target = $region45
    $region44: #{tpu_custom_call.1} parent=1 // pred_region
      %s989 = ssub.s32 256, 256
      %990 = vsyncadd [#allocation4], %s989
      %s992 = sshll.u32 [#allocation8], 4
      %s993 = int_to_ptr.vmem [resolvable:$true] %s992
      %995 = dma.vmem_to_hbm [thread:$0]  %s993, 256, %s7, [#allocation4]
    $region45: #{tpu_custom_call.1} parent=1 // pred_fallthru
      _
    // Predicated region
    $region46: #{tpu_custom_call.1} parent=1 // pred_check
      _
    $region47: #{tpu_custom_call.1} parent=1 // pred_check_branch
      %997 = sbr.rel (0) target = $region49
    $region48: #{tpu_custom_call.1} parent=1 // pred_region
      %998 = dma.done [#allocation4], 256
    $region49: #{tpu_custom_call.1} parent=1 // pred_fallthru
      _
    %999 = vsyncpa [#allocation3], 1
    %1000 = vsyncpa [#allocation6], 1
    %1001 = vsyncpa [#allocation4], 1

</llo_original>
